<compile_context>
chip_gen: v7x
topology: tpu7x:2x2x1
jax: 0.10.0
libtpu: 0.0.40
codegen_flags: <defaults>
</compile_context>

<pallas_src>
import functools
import math

import jax
import jax.numpy as jnp
from jax.experimental import pallas as pl
from jax.experimental.pallas import tpu as pltpu


# ---------------------------------------------------------------------------
# Fast path: embedding table resident in VMEM across all grid steps.
# ---------------------------------------------------------------------------
def _embed_vmem_kernel(ids_ref, table_ref, out_ref, stage_ref,
                       *, scale, token_tile, vocab_size):
    # ids_ref  : (N_pad,) int32 in SMEM (scalar prefetch)
    # table_ref: (V, D)   embedding table, VMEM-resident (constant index_map)
    # out_ref  : (TT, D)  VMEM output block for this token tile
    # stage_ref: (8, D)   VMEM staging tile (static sublane row writes)
    base = pl.program_id(0) * token_tile
    n_groups = token_tile // 8

    def group(g, carry):
        goff = pl.multiple_of(g * 8, 8)
        # Gather 8 rows into the staging tile (static destination sublanes).
        for r in range(8):  # static unroll -> LLO sees all loads
            # Clamp keeps padded / garbage ids inside the table (no VMEM OOB).
            idx = jnp.clip(ids_ref[base + goff + r], 0, vocab_size - 1)
            stage_ref[pl.ds(r, 1), :] = table_ref[pl.ds(idx, 1), :]
        # One aligned (8, D) store with the sqrt(d_model) scale fused in.
        out_ref[pl.ds(goff, 8), :] = (
            stage_ref[...] * scale).astype(out_ref.dtype)
        return carry

    jax.lax.fori_loop(0, n_groups, group, 0)


# ---------------------------------------------------------------------------
# Fallback: huge table stays in HBM; per-row async-DMA gather into the output
# block.  Not exercised by the demo config below.
# TODO(synk): manually double-buffer the output (P4) for very large d_model.
# ---------------------------------------------------------------------------
def _embed_hbm_kernel(ids_ref, table_ref, out_ref, sem,
                      *, scale, token_tile, vocab_size, unroll):
    base = pl.program_id(0) * token_tile

    def issue(t, carry):
        idx = jnp.clip(ids_ref[base + t], 0, vocab_size - 1)
        pltpu.make_async_copy(table_ref.at[idx], out_ref.at[t], sem).start()
        return carry

    jax.lax.fori_loop(0, token_tile, issue, 0, unroll=unroll)

    def drain(t, carry):
        # Wait with the same descriptor that was started for row t.
        idx = jnp.clip(ids_ref[base + t], 0, vocab_size - 1)
        pltpu.make_async_copy(table_ref.at[idx], out_ref.at[t], sem).wait()
        return carry

    jax.lax.fori_loop(0, token_tile, drain, 0, unroll=unroll)

    # Fused scale on the lane-dense block, single unmasked writeback.
    out_ref[...] = (out_ref[...] * scale).astype(out_ref.dtype)


def input_embeddings(ids, table, *, token_tile=None,
                     vmem_table_budget_bytes=24 * 1024 * 1024):
    """Equivalent of InputEmbeddings.forward: table[ids] * sqrt(d_model)."""
    B, S = ids.shape
    V, D = table.shape
    N = B * S

    itemsize = jnp.dtype(table.dtype).itemsize
    row_bytes = D * itemsize
    table_bytes = V * row_bytes
    use_vmem_table = table_bytes <= vmem_table_budget_bytes

    # --- token-tile sizing --------------------------------------------------
    if token_tile is None:
        if use_vmem_table:
            # Target ~1-2 MiB output blocks to amortize per-step overhead.
            token_tile = max(8, min(1024, (2 * 1024 * 1024) // max(row_bytes, 1)))
        else:
            token_tile = 256  # cap outstanding row DMAs on one semaphore
    tt = min(token_tile, ((N + 7) // 8) * 8)
    tt = max(8, (tt // 8) * 8)
    # Prefer a tile that divides N so no padding / post-kernel slice is needed.
    if N % tt != 0:
        for cand in range(tt, 7, -8):
            if N % cand == 0:
                tt = cand
                break
    n_tiles = pl.cdiv(N, tt)
    n_pad = n_tiles * tt

    ids_flat = ids.reshape(N).astype(jnp.int32)
    if n_pad != N:
        ids_flat = jnp.concatenate(
            [ids_flat, jnp.zeros((n_pad - N,), jnp.int32)])

    scale = float(math.sqrt(D))

    # --- VMEM budget --------------------------------------------------------
    out_block_bytes = tt * row_bytes
    if use_vmem_table:
        vmem_need = 2 * table_bytes + 2 * out_block_bytes + 8 * row_bytes + (2 << 20)
    else:
        vmem_need = 2 * out_block_bytes + (2 << 20)
    compiler_params = pltpu.CompilerParams(
        dimension_semantics=("parallel",),   # token tiles shard across TCs (v7x)
        vmem_limit_bytes=max(32 * 1024 * 1024, int(vmem_need)),
    )

    if use_vmem_table:
        kernel = functools.partial(_embed_vmem_kernel, scale=scale,
                                   token_tile=tt, vocab_size=V)
        in_specs = [pl.BlockSpec((V, D), lambda i, ids_sm: (0, 0))]  # resident
        scratch_shapes = [pltpu.VMEM((8, D), table.dtype)]
    else:
        kernel = functools.partial(_embed_hbm_kernel, scale=scale,
                                   token_tile=tt, vocab_size=V,
                                   unroll=8 if tt % 8 == 0 else 1)
        in_specs = [pl.BlockSpec(memory_space=pl.ANY)]               # HBM table
        scratch_shapes = [pltpu.SemaphoreType.DMA(())]

    out = pl.pallas_call(
        kernel,
        out_shape=jax.ShapeDtypeStruct((n_pad, D), table.dtype),
        grid_spec=pltpu.PrefetchScalarGridSpec(
            num_scalar_prefetch=1,            # ids -> SMEM
            grid=(n_tiles,),
            in_specs=in_specs,
            out_specs=pl.BlockSpec((tt, D), lambda i, ids_sm: (i, 0)),
            scratch_shapes=scratch_shapes,
        ),
        compiler_params=compiler_params,
    )(ids_flat, table)

    if n_pad != N:
        out = out[:N]
    return out.reshape(B, S, D)


if __name__ == "__main__":
    # Small shapes consistent with the module: vocab=256, d_model=128, batch=2, seq=8
    d_model = 128
    vocab_size = 256
    batch, seq = 2, 8

    key = jax.random.PRNGKey(0)
    k_tab, k_ids = jax.random.split(key)

    # Deterministic synthetic stand-in for nn.Embedding.weight
    embedding_weight = jax.random.normal(k_tab, (vocab_size, d_model),
                                         dtype=jnp.float32)
    # Token ids
    x = jax.random.randint(k_ids, (batch, seq), 0, vocab_size, dtype=jnp.int32)

    out = input_embeddings(x, embedding_weight)
    out = jax.block_until_ready(out)

    # Reference check (pure JAX)
    ref = embedding_weight[x] * math.sqrt(d_model)
    assert out.shape == (batch, seq, d_model)
    assert out.dtype == jnp.float32
    assert jnp.allclose(out, ref, atol=1e-5, rtol=1e-5)

    print("KERNEL_OK")
</pallas_src>

<mosaic_0001>
module attributes {stable_mosaic.version = 11 : i64} {
  func.func @_embed_vmem_kernel(%arg0: i32, %arg1: memref<16xi32, #tpu.memory_space<smem>>, %arg2: memref<256x128xf32, #tpu.memory_space<vmem>>, %arg3: memref<16x128xf32, #tpu.memory_space<vmem>>, %arg4: memref<8x128xf32, #tpu.memory_space<vmem>>) attributes {dimension_semantics = [#tpu.dimension_semantics<parallel>], iteration_bounds = array<i64: 1>, scalar_prefetch = 1 : i64, scratch_operands = 1 : i64, tpu.core_type = #tpu.core_type<tc>, window_params = [{pipeline_mode = #tpu.pipeline_mode<synchronous>, transform_indices = @transform_0, window_bounds = array<i64: 256, 128>}, {transform_indices = @transform_1, window_bounds = array<i64: 16, 128>}]} {
    %c16_i32 = arith.constant 16 : i32
    %0 = arith.muli %arg0, %c16_i32 : i32
    %c0_i32 = arith.constant 0 : i32
    %c2_i32 = arith.constant 2 : i32
    %1 = arith.addi %c0_i32, %c2_i32 : i32
    %c1_i32 = arith.constant 1 : i32
    scf.for %arg5 = %c0_i32 to %1 step %c1_i32  : i32 {
      %c8_i32 = arith.constant 8 : i32
      %2 = arith.muli %arg5, %c8_i32 : i32
      %3 = tpu.assume_multiple %2, 8 : i32
      %4 = arith.addi %0, %3 : i32
      %c0_i32_1 = arith.constant 0 : i32
      %5 = arith.addi %4, %c0_i32_1 : i32
      %6 = arith.index_cast %5 : i32 to index
      %7 = memref.load %arg1[%6] : memref<16xi32, #tpu.memory_space<smem>>
      %c0_i32_2 = arith.constant 0 : i32
      %c255_i32 = arith.constant 255 : i32
      %8 = arith.maxsi %c0_i32_2, %7 : i32
      %9 = arith.minsi %c255_i32, %8 : i32
      %10 = arith.index_cast %9 : i32 to index
      %c0 = arith.constant 0 : index
      %11 = vector.load %arg2[%10, %c0] : memref<256x128xf32, #tpu.memory_space<vmem>>, vector<1x128xf32>
      %c0_3 = arith.constant 0 : index
      %c0_4 = arith.constant 0 : index
      %12 = vector.load %arg4[%c0_3, %c0_4] : memref<8x128xf32, #tpu.memory_space<vmem>>, vector<1x128xf32>
      tpu.vector_store %arg4[%c0_3, %c0_4], %11 {strides = array<i32>} : memref<8x128xf32, #tpu.memory_space<vmem>>, vector<1x128xf32>,
      %13 = arith.addi %0, %3 : i32
      %c1_i32_5 = arith.constant 1 : i32
      %14 = arith.addi %13, %c1_i32_5 : i32
      %15 = arith.index_cast %14 : i32 to index
      %16 = memref.load %arg1[%15] : memref<16xi32, #tpu.memory_space<smem>>
      %c0_i32_6 = arith.constant 0 : i32
      %c255_i32_7 = arith.constant 255 : i32
      %17 = arith.maxsi %c0_i32_6, %16 : i32
      %18 = arith.minsi %c255_i32_7, %17 : i32
      %19 = arith.index_cast %18 : i32 to index
      %c0_8 = arith.constant 0 : index
      %20 = vector.load %arg2[%19, %c0_8] : memref<256x128xf32, #tpu.memory_space<vmem>>, vector<1x128xf32>
      %c1 = arith.constant 1 : index
      %c0_9 = arith.constant 0 : index
      %21 = vector.load %arg4[%c1, %c0_9] : memref<8x128xf32, #tpu.memory_space<vmem>>, vector<1x128xf32>
      tpu.vector_store %arg4[%c1, %c0_9], %20 {strides = array<i32>} : memref<8x128xf32, #tpu.memory_space<vmem>>, vector<1x128xf32>,
      %22 = arith.addi %0, %3 : i32
      %c2_i32_10 = arith.constant 2 : i32
      %23 = arith.addi %22, %c2_i32_10 : i32
      %24 = arith.index_cast %23 : i32 to index
      %25 = memref.load %arg1[%24] : memref<16xi32, #tpu.memory_space<smem>>
      %c0_i32_11 = arith.constant 0 : i32
      %c255_i32_12 = arith.constant 255 : i32
      %26 = arith.maxsi %c0_i32_11, %25 : i32
      %27 = arith.minsi %c255_i32_12, %26 : i32
      %28 = arith.index_cast %27 : i32 to index
      %c0_13 = arith.constant 0 : index
      %29 = vector.load %arg2[%28, %c0_13] : memref<256x128xf32, #tpu.memory_space<vmem>>, vector<1x128xf32>
      %c2 = arith.constant 2 : index
      %c0_14 = arith.constant 0 : index
      %30 = vector.load %arg4[%c2, %c0_14] : memref<8x128xf32, #tpu.memory_space<vmem>>, vector<1x128xf32>
      tpu.vector_store %arg4[%c2, %c0_14], %29 {strides = array<i32>} : memref<8x128xf32, #tpu.memory_space<vmem>>, vector<1x128xf32>,
      %31 = arith.addi %0, %3 : i32
      %c3_i32 = arith.constant 3 : i32
      %32 = arith.addi %31, %c3_i32 : i32
      %33 = arith.index_cast %32 : i32 to index
      %34 = memref.load %arg1[%33] : memref<16xi32, #tpu.memory_space<smem>>
      %c0_i32_15 = arith.constant 0 : i32
      %c255_i32_16 = arith.constant 255 : i32
      %35 = arith.maxsi %c0_i32_15, %34 : i32
      %36 = arith.minsi %c255_i32_16, %35 : i32
      %37 = arith.index_cast %36 : i32 to index
      %c0_17 = arith.constant 0 : index
      %38 = vector.load %arg2[%37, %c0_17] : memref<256x128xf32, #tpu.memory_space<vmem>>, vector<1x128xf32>
      %c3 = arith.constant 3 : index
      %c0_18 = arith.constant 0 : index
      %39 = vector.load %arg4[%c3, %c0_18] : memref<8x128xf32, #tpu.memory_space<vmem>>, vector<1x128xf32>
      tpu.vector_store %arg4[%c3, %c0_18], %38 {strides = array<i32>} : memref<8x128xf32, #tpu.memory_space<vmem>>, vector<1x128xf32>,
      %40 = arith.addi %0, %3 : i32
      %c4_i32 = arith.constant 4 : i32
      %41 = arith.addi %40, %c4_i32 : i32
      %42 = arith.index_cast %41 : i32 to index
      %43 = memref.load %arg1[%42] : memref<16xi32, #tpu.memory_space<smem>>
      %c0_i32_19 = arith.constant 0 : i32
      %c255_i32_20 = arith.constant 255 : i32
      %44 = arith.maxsi %c0_i32_19, %43 : i32
      %45 = arith.minsi %c255_i32_20, %44 : i32
      %46 = arith.index_cast %45 : i32 to index
      %c0_21 = arith.constant 0 : index
      %47 = vector.load %arg2[%46, %c0_21] : memref<256x128xf32, #tpu.memory_space<vmem>>, vector<1x128xf32>
      %c4 = arith.constant 4 : index
      %c0_22 = arith.constant 0 : index
      %48 = vector.load %arg4[%c4, %c0_22] : memref<8x128xf32, #tpu.memory_space<vmem>>, vector<1x128xf32>
      tpu.vector_store %arg4[%c4, %c0_22], %47 {strides = array<i32>} : memref<8x128xf32, #tpu.memory_space<vmem>>, vector<1x128xf32>,
      %49 = arith.addi %0, %3 : i32
      %c5_i32 = arith.constant 5 : i32
      %50 = arith.addi %49, %c5_i32 : i32
      %51 = arith.index_cast %50 : i32 to index
      %52 = memref.load %arg1[%51] : memref<16xi32, #tpu.memory_space<smem>>
      %c0_i32_23 = arith.constant 0 : i32
      %c255_i32_24 = arith.constant 255 : i32
      %53 = arith.maxsi %c0_i32_23, %52 : i32
      %54 = arith.minsi %c255_i32_24, %53 : i32
      %55 = arith.index_cast %54 : i32 to index
      %c0_25 = arith.constant 0 : index
      %56 = vector.load %arg2[%55, %c0_25] : memref<256x128xf32, #tpu.memory_space<vmem>>, vector<1x128xf32>
      %c5 = arith.constant 5 : index
      %c0_26 = arith.constant 0 : index
      %57 = vector.load %arg4[%c5, %c0_26] : memref<8x128xf32, #tpu.memory_space<vmem>>, vector<1x128xf32>
      tpu.vector_store %arg4[%c5, %c0_26], %56 {strides = array<i32>} : memref<8x128xf32, #tpu.memory_space<vmem>>, vector<1x128xf32>,
      %58 = arith.addi %0, %3 : i32
      %c6_i32 = arith.constant 6 : i32
      %59 = arith.addi %58, %c6_i32 : i32
      %60 = arith.index_cast %59 : i32 to index
      %61 = memref.load %arg1[%60] : memref<16xi32, #tpu.memory_space<smem>>
      %c0_i32_27 = arith.constant 0 : i32
      %c255_i32_28 = arith.constant 255 : i32
      %62 = arith.maxsi %c0_i32_27, %61 : i32
      %63 = arith.minsi %c255_i32_28, %62 : i32
      %64 = arith.index_cast %63 : i32 to index
      %c0_29 = arith.constant 0 : index
      %65 = vector.load %arg2[%64, %c0_29] : memref<256x128xf32, #tpu.memory_space<vmem>>, vector<1x128xf32>
      %c6 = arith.constant 6 : index
      %c0_30 = arith.constant 0 : index
      %66 = vector.load %arg4[%c6, %c0_30] : memref<8x128xf32, #tpu.memory_space<vmem>>, vector<1x128xf32>
      tpu.vector_store %arg4[%c6, %c0_30], %65 {strides = array<i32>} : memref<8x128xf32, #tpu.memory_space<vmem>>, vector<1x128xf32>,
      %67 = arith.addi %0, %3 : i32
      %c7_i32 = arith.constant 7 : i32
      %68 = arith.addi %67, %c7_i32 : i32
      %69 = arith.index_cast %68 : i32 to index
      %70 = memref.load %arg1[%69] : memref<16xi32, #tpu.memory_space<smem>>
      %c0_i32_31 = arith.constant 0 : i32
      %c255_i32_32 = arith.constant 255 : i32
      %71 = arith.maxsi %c0_i32_31, %70 : i32
      %72 = arith.minsi %c255_i32_32, %71 : i32
      %73 = arith.index_cast %72 : i32 to index
      %c0_33 = arith.constant 0 : index
      %74 = vector.load %arg2[%73, %c0_33] : memref<256x128xf32, #tpu.memory_space<vmem>>, vector<1x128xf32>
      %c7 = arith.constant 7 : index
      %c0_34 = arith.constant 0 : index
      %75 = vector.load %arg4[%c7, %c0_34] : memref<8x128xf32, #tpu.memory_space<vmem>>, vector<1x128xf32>
      tpu.vector_store %arg4[%c7, %c0_34], %74 {strides = array<i32>} : memref<8x128xf32, #tpu.memory_space<vmem>>, vector<1x128xf32>,
      %c0_35 = arith.constant 0 : index
      %c0_36 = arith.constant 0 : index
      %76 = vector.load %arg4[%c0_35, %c0_36] : memref<8x128xf32, #tpu.memory_space<vmem>>, vector<8x128xf32>
      %cst = arith.constant 11.3137083 : f32
      %77 = vector.broadcast %cst : f32 to vector<8x128xf32>
      %78 = arith.mulf %76, %77 : vector<8x128xf32>
      %79 = arith.index_cast %3 : i32 to index
      %c0_37 = arith.constant 0 : index
      %80 = vector.load %arg3[%79, %c0_37] : memref<16x128xf32, #tpu.memory_space<vmem>>, vector<8x128xf32>
      tpu.vector_store %arg3[%79, %c0_37], %78 {strides = array<i32>} : memref<16x128xf32, #tpu.memory_space<vmem>>, vector<8x128xf32>,
    }
    %c2_i32_0 = arith.constant 2 : i32
    return
  }
  func.func @transform_0(%arg0: i32, %arg1: memref<16xi32, #tpu.memory_space<smem>>) -> (i32, i32) {
    %c0_i32 = arith.constant 0 : i32
    %c0_i32_0 = arith.constant 0 : i32
    %c0_i32_1 = arith.constant 0 : i32
    return %c0_i32, %c0_i32_0 : i32, i32
  }
  func.func @transform_1(%arg0: i32, %arg1: memref<16xi32, #tpu.memory_space<smem>>) -> (i32, i32) {
    %c0_i32 = arith.constant 0 : i32
    %c0_i32_0 = arith.constant 0 : i32
    return %arg0, %c0_i32 : i32, i32
  }
}

</mosaic_0001>

<llo_original>
// kernel: tpu_custom_call.1
$region0: #{tpu_custom_call.1}
  #allocation0 [shape = 'u32[]', space=smem, size = 0x4, offset = 0x4, fixed_abs, tag = 'smem constant byte address 0x4 - core index']
  #allocation1 [shape = 'u32[144,128]{1,0:T(1,128)}', space=vmem, size = 0x12000, scoped, tag = 'internal scratch']
  #allocation2 [shape = 'f32[8,128]{1,0:T(8,128)}', space=vmem, size = 0x1000, scoped, tag = 'scratch operand']
  #allocation3 [shape = 's32[1]{0}', space=sflag, size = 0x4, scoped, tag = 'scoped memory for tpu_custom_call.1']
  #allocation4 [shape = 'u8[512]{0}', space=smem, size = 0x200, scoped, tag = 'prefetched SMEM operand 0']
  %s0 = inlined_call_operand.hbm [shape: s32[16], index: 0, kind: input, shape index: {}]
  %s1 = inlined_call_operand.hbm [shape: f32[256,128], index: 1, kind: input, shape index: {}]
  %s2 = inlined_call_operand.hbm [shape: f32[16,128], index: 2, kind: output, shape index: {}]
  %s3 = sld [smem:[#allocation0]]
  $region25: #{tpu_custom_call.1} parent=0
    _
  %s5 = ssub.s32 1, %s3
  %s6 = scalar_select 0, %s5, %s3
  %8 = dma.hbm_to_smem %s0, 16, [#allocation4], [#allocation3]
  %9 = dma.done [#allocation3], 16
  %10 = sfence
  $region1: #{tpu_custom_call.1} parent=0
    #allocation5 [shape = 'u8[131072]{0}', space=vmem, size = 0x20000, scoped, tag = 'input window, operand 1, single buffered']
    #allocation6 [shape = 's32[1]{0}', space=sflag, size = 0x4, scoped, tag = 'scoped memory for tpu_custom_call.1']
    #allocation7 [shape = 's32[1]{0}', space=sflag, size = 0x4, scoped, tag = 'scoped memory for tpu_custom_call.1']
    #allocation8 [shape = 'u8[8192]{0}', space=vmem, size = 0x2000, scoped, tag = 'output window, operand 0, single buffered']
    %11 = vsyncpa [#allocation6], 0
    %12 = vsyncpa [#allocation7], 0
    // Predicated region
    $region2: #{tpu_custom_call.1} parent=1 // pred_check
      _
    $region3: #{tpu_custom_call.1} parent=1 // pred_check_branch
      %14 = sbr.rel (0) target = $region5
    $region4: #{tpu_custom_call.1} parent=1 // pred_region
      %s16 = ssub.s32 4096, 4096
      %17 = vsyncadd [#allocation6], %s16
      %s18 = sshll.u32 [#allocation5], 4
      %s19 = int_to_ptr.vmem [resolvable:$true] %s18
      %24 = dma.hbm_to_vmem [thread:$0]  %s1, 4096, %s19, [#allocation6], 128, 128, 8
    $region5: #{tpu_custom_call.1} parent=1 // pred_fallthru
      _
    // Predicated region
    $region6: #{tpu_custom_call.1} parent=1 // pred_check
      _
    $region7: #{tpu_custom_call.1} parent=1 // pred_check_branch
      %26 = sbr.rel (0) target = $region9
    $region8: #{tpu_custom_call.1} parent=1 // pred_region
      %27 = dma.done [#allocation6], 4096
    $region9: #{tpu_custom_call.1} parent=1 // pred_fallthru
      _
    %s28 = smul.u32 0, 16
    loop: start=0, step=1, limit=2
    $region10: #{tpu_custom_call.1} parent=1 // loop_pre_header
      _
    $region11: #{tpu_custom_call.1} parent=1 // loop_header
      %s30 = sphi 0, %s34
      %p31 = scmp.ge.s32.totalorder %s30, 2
    $region12: #{tpu_custom_call.1} parent=1 // loop_header_branch
      %33 = sbr.rel (%p31) target = $region16
    $region13: #{tpu_custom_call.1} parent=1 // loop_body
      %s35 = smul.u32 %s30, 8
      %s36 = sadd.s32 %s28, %s35
      %s37 = sld [smem:[#allocation4 + %s36]]
      %p38 = scmp.gt.s32.totalorder %s37, 0
      %s39 = scalar_select %p38, %s37, 0
      %p40 = scmp.lt.s32.totalorder %s39, 255
      %s41 = scalar_select %p40, %s39, 255
      %s42 = scalar_lea.vmem [#allocation5], %s41
      %v43 = vld [vmem:[%s42] sm:$0x1]
      %44 = vst [vmem:[#allocation2] sm:$0x1] %v43
      %s45 = sadd.s32 %s36, 1
      %s46 = sld [smem:[#allocation4 + %s45]]
      %p47 = scmp.gt.s32.totalorder %s46, 0
      %s48 = scalar_select %p47, %s46, 0
      %p49 = scmp.lt.s32.totalorder %s48, 255
      %s50 = scalar_select %p49, %s48, 255
      %s51 = scalar_lea.vmem [#allocation5], %s50
      %v52 = vld [vmem:[%s51] sm:$0x1]
      %53 = vst [vmem:[#allocation2 + $0x1] sm:$0x1] %v52
      %s54 = sadd.s32 %s36, 2
      %s55 = sld [smem:[#allocation4 + %s54]]
      %p56 = scmp.gt.s32.totalorder %s55, 0
      %s57 = scalar_select %p56, %s55, 0
      %p58 = scmp.lt.s32.totalorder %s57, 255
      %s59 = scalar_select %p58, %s57, 255
      %s60 = scalar_lea.vmem [#allocation5], %s59
      %v61 = vld [vmem:[%s60] sm:$0x1]
      %62 = vst [vmem:[#allocation2 + $0x2] sm:$0x1] %v61
      %s63 = sadd.s32 %s36, 3
      %s64 = sld [smem:[#allocation4 + %s63]]
      %p65 = scmp.gt.s32.totalorder %s64, 0
      %s66 = scalar_select %p65, %s64, 0
      %p67 = scmp.lt.s32.totalorder %s66, 255
      %s68 = scalar_select %p67, %s66, 255
      %s69 = scalar_lea.vmem [#allocation5], %s68
      %v70 = vld [vmem:[%s69] sm:$0x1]
      %71 = vst [vmem:[#allocation2 + $0x3] sm:$0x1] %v70
      %s72 = sadd.s32 %s36, 4
      %s73 = sld [smem:[#allocation4 + %s72]]
      %p74 = scmp.gt.s32.totalorder %s73, 0
      %s75 = scalar_select %p74, %s73, 0
      %p76 = scmp.lt.s32.totalorder %s75, 255
      %s77 = scalar_select %p76, %s75, 255
      %s78 = scalar_lea.vmem [#allocation5], %s77
      %v79 = vld [vmem:[%s78] sm:$0x1]
      %80 = vst [vmem:[#allocation2 + $0x4] sm:$0x1] %v79
      %s81 = sadd.s32 %s36, 5
      %s82 = sld [smem:[#allocation4 + %s81]]
      %p83 = scmp.gt.s32.totalorder %s82, 0
      %s84 = scalar_select %p83, %s82, 0
      %p85 = scmp.lt.s32.totalorder %s84, 255
      %s86 = scalar_select %p85, %s84, 255
      %s87 = scalar_lea.vmem [#allocation5], %s86
      %v88 = vld [vmem:[%s87] sm:$0x1]
      %89 = vst [vmem:[#allocation2 + $0x5] sm:$0x1] %v88
      %s90 = sadd.s32 %s36, 6
      %s91 = sld [smem:[#allocation4 + %s90]]
      %p92 = scmp.gt.s32.totalorder %s91, 0
      %s93 = scalar_select %p92, %s91, 0
      %p94 = scmp.lt.s32.totalorder %s93, 255
      %s95 = scalar_select %p94, %s93, 255
      %s96 = scalar_lea.vmem [#allocation5], %s95
      %v97 = vld [vmem:[%s96] sm:$0x1]
      %98 = vst [vmem:[#allocation2 + $0x6] sm:$0x1] %v97
      %s99 = sadd.s32 %s36, 7
      %s100 = sld [smem:[#allocation4 + %s99]]
      %p101 = scmp.gt.s32.totalorder %s100, 0
      %s102 = scalar_select %p101, %s100, 0
      %p103 = scmp.lt.s32.totalorder %s102, 255
      %s104 = scalar_select %p103, %s102, 255
      %s105 = scalar_lea.vmem [#allocation5], %s104
      %v106 = vld [vmem:[%s105] sm:$0x1]
      %107 = vst [vmem:[#allocation2 + $0x7] sm:$0x1] %v106
      %v108 = vld [vmem:[#allocation2] sm:$0xff]
      %v109 = vmul.f32 %v108, 11.313708
      %s110 = scalar_lea.vmem [#allocation8], %s35
      %111 = vst [vmem:[%s110] sm:$0xff] %v109
    $region14: #{tpu_custom_call.1} parent=1 // loop_footer
      %s34 = sadd.s32 1, %s30
    $region15: #{tpu_custom_call.1} parent=1 // loop_footer_branch
      %29 = sbr.rel target = $region11
    $region16: #{tpu_custom_call.1} parent=1 // loop_exit
      _
    // Predicated region
    $region17: #{tpu_custom_call.1} parent=1 // pred_check
      _
    $region18: #{tpu_custom_call.1} parent=1 // pred_check_branch
      %113 = sbr.rel (0) target = $region20
    $region19: #{tpu_custom_call.1} parent=1 // pred_region
      %s115 = ssub.s32 256, 256
      %116 = vsyncadd [#allocation7], %s115
      %s117 = sshll.u32 [#allocation8], 4
      %s118 = int_to_ptr.vmem [resolvable:$true] %s117
      %123 = dma.vmem_to_hbm [thread:$0]  %s118, 256, %s2, [#allocation7], 128, 128, 8
    $region20: #{tpu_custom_call.1} parent=1 // pred_fallthru
      _
    // Predicated region
    $region21: #{tpu_custom_call.1} parent=1 // pred_check
      _
    $region22: #{tpu_custom_call.1} parent=1 // pred_check_branch
      %125 = sbr.rel (0) target = $region24
    $region23: #{tpu_custom_call.1} parent=1 // pred_region
      %126 = dma.done [#allocation7], 256
    $region24: #{tpu_custom_call.1} parent=1 // pred_fallthru
      _
    %127 = vsyncpa [#allocation6], 1
    %128 = vsyncpa [#allocation7], 1

</llo_original>
